<compile_context>
chip_gen: v7x
topology: tpu7x:2x2x1
jax: 0.10.0
libtpu: 0.0.40
codegen_flags: <defaults>
</compile_context>

<pallas_src>
import functools

import jax
import jax.numpy as jnp
from jax.experimental import pallas as pl
from jax.experimental.pallas import tpu as pltpu


def ff_relu_bn_kernel(x_ref, w_ref, b_ref, scale_ref, shift_ref, o_ref, acc_ref):
    k = pl.program_id(2)

    @pl.when(k == 0)
    def _():
        acc_ref[...] = jnp.zeros_like(acc_ref)

    # x tile: (TM, TK); w tile (PyTorch layout): (TN, TK); contract over K dims.
    acc_ref[...] += jax.lax.dot_general(
        x_ref[...], w_ref[...],
        dimension_numbers=(((1,), (1,)), ((), ())),
        preferred_element_type=jnp.float32,
    )

    @pl.when(k == pl.num_programs(2) - 1)
    def _():
        y = acc_ref[...] + b_ref[...]          # Linear bias (pre-ReLU)
        y = jnp.maximum(y, 0.0)                # ReLU
        # Folded BatchNorm1d (eval): y * scale + shift
        o_ref[...] = (y * scale_ref[...] + shift_ref[...]).astype(o_ref.dtype)


def _round_up(v, m):
    return ((v + m - 1) // m) * m


def _pad2(a, rows, cols):
    pr, pc = rows - a.shape[0], cols - a.shape[1]
    if pr == 0 and pc == 0:
        return a
    return jnp.pad(a, ((0, pr), (0, pc)))


@functools.partial(jax.jit, static_argnames=("tile_m", "tile_n", "tile_k"))
def feedforward_relu_block(x, weight, bias, gamma, beta, running_mean, running_var,
                           *, tile_m=256, tile_n=256, tile_k=512):
    """x: (B, in_features); weight: (out_features, in_features) (PyTorch layout)."""
    eps = 1e-5
    B, in_features = x.shape
    out_features = weight.shape[0]

    # Fold bias/BN into per-feature vectors (one-time O(out_features) work).
    scale = gamma * jax.lax.rsqrt(running_var + eps)
    shift = beta - running_mean * scale

    # Pad to (8, 128)-friendly multiples, then round up to tile multiples.
    Mp = _round_up(B, 8)
    Kp = _round_up(in_features, 128)
    Np = _round_up(out_features, 128)
    tm = min(tile_m, Mp)
    tn = min(tile_n, Np)
    tk = min(tile_k, Kp)
    Mp = _round_up(Mp, tm)
    Kp = _round_up(Kp, tk)
    Np = _round_up(Np, tn)

    xp = _pad2(x, Mp, Kp)
    wp = _pad2(weight, Np, Kp)
    bp = _pad2(bias.reshape(1, -1), 1, Np)
    scp = _pad2(scale.reshape(1, -1), 1, Np)
    shp = _pad2(shift.reshape(1, -1), 1, Np)

    grid = (Mp // tm, Np // tn, Kp // tk)

    out = pl.pallas_call(
        ff_relu_bn_kernel,
        out_shape=jax.ShapeDtypeStruct((Mp, Np), x.dtype),
        grid_spec=pltpu.PrefetchScalarGridSpec(
            num_scalar_prefetch=0,
            grid=grid,
            in_specs=[
                pl.BlockSpec((tm, tk), lambda i, j, k: (i, k)),   # x
                pl.BlockSpec((tn, tk), lambda i, j, k: (j, k)),   # W (out, in)
                pl.BlockSpec((1, tn), lambda i, j, k: (0, j)),    # bias
                pl.BlockSpec((1, tn), lambda i, j, k: (0, j)),    # BN scale
                pl.BlockSpec((1, tn), lambda i, j, k: (0, j)),    # BN shift
            ],
            out_specs=pl.BlockSpec((tm, tn), lambda i, j, k: (i, j)),
            scratch_shapes=[pltpu.VMEM((tm, tn), jnp.float32)],
        ),
        compiler_params=pltpu.CompilerParams(
            dimension_semantics=("parallel", "parallel", "arbitrary"),
            vmem_limit_bytes=32 * 1024 * 1024,
        ),
    )(xp, wp, bp, scp, shp)

    return out[:B, :out_features]


def _reference(x, weight, bias, gamma, beta, running_mean, running_var, eps=1e-5):
    y = x @ weight.T + bias
    y = jnp.maximum(y, 0.0)
    return gamma * (y - running_mean) / jnp.sqrt(running_var + eps) + beta


if __name__ == "__main__":
    key = jax.random.PRNGKey(0)
    B, in_features, out_features = 8, 32, 64

    k_x, k_w, k_b, k_g, k_be, k_m, k_v = jax.random.split(key, 7)
    x = jax.random.normal(k_x, (B, in_features), dtype=jnp.float32)

    # Deterministic synthetic parameters (shapes per nn.Linear / nn.BatchNorm1d).
    bound = 1.0 / jnp.sqrt(in_features)
    weight = jax.random.uniform(k_w, (out_features, in_features),
                                minval=-bound, maxval=bound, dtype=jnp.float32)
    bias = jax.random.uniform(k_b, (out_features,),
                              minval=-bound, maxval=bound, dtype=jnp.float32)
    gamma = 1.0 + 0.1 * jax.random.normal(k_g, (out_features,), dtype=jnp.float32)
    beta = 0.1 * jax.random.normal(k_be, (out_features,), dtype=jnp.float32)
    running_mean = 0.05 * jax.random.normal(k_m, (out_features,), dtype=jnp.float32)
    running_var = 1.0 + 0.1 * jax.random.uniform(k_v, (out_features,),
                                                 dtype=jnp.float32)

    out = feedforward_relu_block(x, weight, bias, gamma, beta,
                                 running_mean, running_var)
    out = jax.block_until_ready(out)

    ref = _reference(x, weight, bias, gamma, beta, running_mean, running_var)
    assert out.shape == (B, out_features)
    assert jnp.allclose(out, ref, atol=1e-5, rtol=1e-5), "mismatch vs reference"
    print("KERNEL_OK")
</pallas_src>

<mosaic_0001>
module attributes {stable_mosaic.version = 11 : i64} {
  func.func @ff_relu_bn_kernel(%arg0: i32, %arg1: i32, %arg2: i32, %arg3: memref<8x128xf32, #tpu.memory_space<vmem>>, %arg4: memref<128x128xf32, #tpu.memory_space<vmem>>, %arg5: memref<1x128xf32, #tpu.memory_space<vmem>>, %arg6: memref<1x128xf32, #tpu.memory_space<vmem>>, %arg7: memref<1x128xf32, #tpu.memory_space<vmem>>, %arg8: memref<8x128xf32, #tpu.memory_space<vmem>>, %arg9: memref<8x128xf32, #tpu.memory_space<vmem>>) attributes {dimension_semantics = [#tpu.dimension_semantics<parallel>, #tpu.dimension_semantics<parallel>, #tpu.dimension_semantics<arbitrary>], iteration_bounds = array<i64: 1, 1, 1>, scalar_prefetch = 0 : i64, scratch_operands = 1 : i64, tpu.core_type = #tpu.core_type<tc>, window_params = [{transform_indices = @transform_0, window_bounds = array<i64: 8, 128>}, {transform_indices = @transform_1, window_bounds = array<i64: 128, 128>}, {transform_indices = @transform_2, window_bounds = array<i64: 1, 128>}, {transform_indices = @transform_3, window_bounds = array<i64: 1, 128>}, {transform_indices = @transform_4, window_bounds = array<i64: 1, 128>}, {transform_indices = @transform_5, window_bounds = array<i64: 8, 128>}]} {
    %c0_i32 = arith.constant 0 : i32
    %0 = arith.cmpi eq, %arg2, %c0_i32 : i32
    %1 = arith.extui %0 : i1 to i32
    %c0_i32_0 = arith.constant 0 : i32
    %2 = arith.cmpi ne, %1, %c0_i32_0 : i32
    scf.if %2 {
      %cst_10 = arith.constant 0.000000e+00 : f32
      %12 = vector.broadcast %cst_10 : f32 to vector<8x128xf32>
      %c0_11 = arith.constant 0 : index
      %c0_12 = arith.constant 0 : index
      %13 = vector.load %arg9[%c0_11, %c0_12] : memref<8x128xf32, #tpu.memory_space<vmem>>, vector<8x128xf32>
      tpu.vector_store %arg9[%c0_11, %c0_12], %12 {strides = array<i32>} : memref<8x128xf32, #tpu.memory_space<vmem>>, vector<8x128xf32>,
    } else {
    }
    %c0 = arith.constant 0 : index
    %c0_1 = arith.constant 0 : index
    %3 = vector.load %arg9[%c0, %c0_1] : memref<8x128xf32, #tpu.memory_space<vmem>>, vector<8x128xf32>
    %c0_2 = arith.constant 0 : index
    %c0_3 = arith.constant 0 : index
    %4 = vector.load %arg3[%c0_2, %c0_3] : memref<8x128xf32, #tpu.memory_space<vmem>>, vector<8x128xf32>
    %c0_4 = arith.constant 0 : index
    %c0_5 = arith.constant 0 : index
    %5 = vector.load %arg4[%c0_4, %c0_5] : memref<128x128xf32, #tpu.memory_space<vmem>>, vector<128x128xf32>
    %cst = arith.constant dense<0.000000e+00> : vector<8x128xf32>
    %6 = tpu.matmul %4, %5, %cst {dimension_numbers = #tpu.dot_dimension_numbers<[1], [1], [0], [0], [0, 0, 1, 0], [], []>} : vector<8x128xf32>, vector<128x128xf32>, vector<8x128xf32> -> vector<8x128xf32>
    %7 = arith.addf %3, %6 : vector<8x128xf32>
    %c0_6 = arith.constant 0 : index
    %c0_7 = arith.constant 0 : index
    %8 = vector.load %arg9[%c0_6, %c0_7] : memref<8x128xf32, #tpu.memory_space<vmem>>, vector<8x128xf32>
    tpu.vector_store %arg9[%c0_6, %c0_7], %7 {strides = array<i32>} : memref<8x128xf32, #tpu.memory_space<vmem>>, vector<8x128xf32>,
    %c0_i32_8 = arith.constant 0 : i32
    %9 = arith.cmpi eq, %arg2, %c0_i32_8 : i32
    %10 = arith.extui %9 : i1 to i32
    %c0_i32_9 = arith.constant 0 : i32
    %11 = arith.cmpi ne, %10, %c0_i32_9 : i32
    scf.if %11 {
      %c0_10 = arith.constant 0 : index
      %c0_11 = arith.constant 0 : index
      %12 = vector.load %arg9[%c0_10, %c0_11] : memref<8x128xf32, #tpu.memory_space<vmem>>, vector<8x128xf32>
      %c0_12 = arith.constant 0 : index
      %c0_13 = arith.constant 0 : index
      %13 = vector.load %arg5[%c0_12, %c0_13] : memref<1x128xf32, #tpu.memory_space<vmem>>, vector<1x128xf32>
      %14 = vector.broadcast %13 : vector<1x128xf32> to vector<8x128xf32>
      %15 = arith.addf %12, %14 : vector<8x128xf32>
      %cst_14 = arith.constant 0.000000e+00 : f32
      %16 = vector.broadcast %cst_14 : f32 to vector<8x128xf32>
      %17 = arith.maximumf %15, %16 : vector<8x128xf32>
      %c0_15 = arith.constant 0 : index
      %c0_16 = arith.constant 0 : index
      %18 = vector.load %arg6[%c0_15, %c0_16] : memref<1x128xf32, #tpu.memory_space<vmem>>, vector<1x128xf32>
      %19 = vector.broadcast %18 : vector<1x128xf32> to vector<8x128xf32>
      %20 = arith.mulf %17, %19 : vector<8x128xf32>
      %c0_17 = arith.constant 0 : index
      %c0_18 = arith.constant 0 : index
      %21 = vector.load %arg7[%c0_17, %c0_18] : memref<1x128xf32, #tpu.memory_space<vmem>>, vector<1x128xf32>
      %22 = vector.broadcast %21 : vector<1x128xf32> to vector<8x128xf32>
      %23 = arith.addf %20, %22 : vector<8x128xf32>
      %c0_19 = arith.constant 0 : index
      %c0_20 = arith.constant 0 : index
      %24 = vector.load %arg8[%c0_19, %c0_20] : memref<8x128xf32, #tpu.memory_space<vmem>>, vector<8x128xf32>
      tpu.vector_store %arg8[%c0_19, %c0_20], %23 {strides = array<i32>} : memref<8x128xf32, #tpu.memory_space<vmem>>, vector<8x128xf32>,
    } else {
    }
    return
  }
  func.func @transform_0(%arg0: i32, %arg1: i32, %arg2: i32) -> (i32, i32) {
    %c0_i32 = arith.constant 0 : i32
    return %arg0, %arg2 : i32, i32
  }
  func.func @transform_1(%arg0: i32, %arg1: i32, %arg2: i32) -> (i32, i32) {
    %c0_i32 = arith.constant 0 : i32
    return %arg1, %arg2 : i32, i32
  }
  func.func @transform_2(%arg0: i32, %arg1: i32, %arg2: i32) -> (i32, i32) {
    %c0_i32 = arith.constant 0 : i32
    %c0_i32_0 = arith.constant 0 : i32
    return %c0_i32, %arg1 : i32, i32
  }
  func.func @transform_3(%arg0: i32, %arg1: i32, %arg2: i32) -> (i32, i32) {
    %c0_i32 = arith.constant 0 : i32
    %c0_i32_0 = arith.constant 0 : i32
    return %c0_i32, %arg1 : i32, i32
  }
  func.func @transform_4(%arg0: i32, %arg1: i32, %arg2: i32) -> (i32, i32) {
    %c0_i32 = arith.constant 0 : i32
    %c0_i32_0 = arith.constant 0 : i32
    return %c0_i32, %arg1 : i32, i32
  }
  func.func @transform_5(%arg0: i32, %arg1: i32, %arg2: i32) -> (i32, i32) {
    %c0_i32 = arith.constant 0 : i32
    return %arg0, %arg1 : i32, i32
  }
}

</mosaic_0001>

<llo_original>
// kernel: feedforward_relu_block.1
$region0: #{feedforward_relu_block.1}
  #allocation0 [shape = 'u32[]', space=smem, size = 0x4, offset = 0x4, fixed_abs, tag = 'smem constant byte address 0x4 - core index']
  #allocation1 [shape = 'u32[144,128]{1,0:T(1,128)}', space=vmem, size = 0x12000, scoped, tag = 'internal scratch']
  #allocation2 [shape = 'f32[8,128]{1,0:T(8,128)}', space=vmem, size = 0x1000, scoped, tag = 'scratch operand']
  %s0 = inlined_call_operand.vmem [shape: f32[8,128], index: 0, kind: input, shape index: {}]
  %s1 = inlined_call_operand.vmem [shape: f32[128,128], index: 1, kind: input, shape index: {}]
  %s2 = inlined_call_operand.vmem [shape: f32[1,128], index: 2, kind: input, shape index: {}]
  %s3 = inlined_call_operand.vmem [shape: f32[1,128], index: 3, kind: input, shape index: {}]
  %s4 = inlined_call_operand.vmem [shape: f32[1,128], index: 4, kind: input, shape index: {}]
  %s5 = inlined_call_operand.hbm [shape: f32[8,128], index: 5, kind: output, shape index: {}]
  %s6 = sld [smem:[#allocation0]]
  $region38: #{feedforward_relu_block.1} parent=0
    _
  %s8 = ssub.s32 1, %s6
  %s9 = scalar_select 0, %s8, %s6
  $region1: #{feedforward_relu_block.1} parent=0
    #allocation3 [shape = 'u8[4096]{0}', space=vmem, size = 0x1000, scoped, tag = 'output window, operand 0, single buffered']
    #allocation4 [shape = 's32[1]{0}', space=sflag, size = 0x4, scoped, tag = 'scoped memory for feedforward_relu_block.1']
    %10 = vsyncpa [#allocation4], 0
    // Predicated region
    $region2: #{feedforward_relu_block.1} parent=1 // pred_check
      _
    $region3: #{feedforward_relu_block.1} parent=1 // pred_check_branch
      %12 = sbr.rel (0) target = $region5
    $region4: #{feedforward_relu_block.1} parent=1 // pred_region
      _
    $region5: #{feedforward_relu_block.1} parent=1 // pred_fallthru
      _
    // Predicated region
    $region6: #{feedforward_relu_block.1} parent=1 // pred_check
      _
    $region7: #{feedforward_relu_block.1} parent=1 // pred_check_branch
      %14 = sbr.rel (0) target = $region9
    $region8: #{feedforward_relu_block.1} parent=1 // pred_region
      _
    $region9: #{feedforward_relu_block.1} parent=1 // pred_fallthru
      _
    // Predicated region
    $region10: #{feedforward_relu_block.1} parent=1 // pred_check
      _
    $region11: #{feedforward_relu_block.1} parent=1 // pred_check_branch
      %16 = sbr.rel (0) target = $region13
    $region12: #{feedforward_relu_block.1} parent=1 // pred_region
      _
    $region13: #{feedforward_relu_block.1} parent=1 // pred_fallthru
      _
    // Predicated region
    $region14: #{feedforward_relu_block.1} parent=1 // pred_check
      _
    $region15: #{feedforward_relu_block.1} parent=1 // pred_check_branch
      %18 = sbr.rel (0) target = $region17
    $region16: #{feedforward_relu_block.1} parent=1 // pred_region
      _
    $region17: #{feedforward_relu_block.1} parent=1 // pred_fallthru
      _
    // Predicated region
    $region18: #{feedforward_relu_block.1} parent=1 // pred_check
      _
    $region19: #{feedforward_relu_block.1} parent=1 // pred_check_branch
      %20 = sbr.rel (0) target = $region21
    $region20: #{feedforward_relu_block.1} parent=1 // pred_region
      _
    $region21: #{feedforward_relu_block.1} parent=1 // pred_fallthru
      _
    %p21 = scmp.eq.s32.totalorder 0, 0
    // Predicated region
    $region22: #{feedforward_relu_block.1} parent=1 // pred_check
      %p22 = pneg %p21
    $region23: #{feedforward_relu_block.1} parent=1 // pred_check_branch
      %24 = sbr.rel (%p22) target = $region25
    $region24: #{feedforward_relu_block.1} parent=1 // pred_region
      %25 = vst [vmem:[#allocation2] sm:$0xff] 0.0
    $region25: #{feedforward_relu_block.1} parent=1 // pred_fallthru
      _
    %v26 = vld [vmem:[#allocation2] sm:$0xff]
    %v27 = vld [vmem:[%s0] sm:$0xff]
    %v28 = vld [vmem:[%s1] sm:$0xff]
    %v29 = vld [vmem:[%s1 + $0x8] sm:$0xff]
    %v30 = vld [vmem:[%s1 + $0x10] sm:$0xff]
    %v31 = vld [vmem:[%s1 + $0x18] sm:$0xff]
    %v32 = vld [vmem:[%s1 + $0x20] sm:$0xff]
    %v33 = vld [vmem:[%s1 + $0x28] sm:$0xff]
    %v34 = vld [vmem:[%s1 + $0x30] sm:$0xff]
    %v35 = vld [vmem:[%s1 + $0x38] sm:$0xff]
    %v36 = vld [vmem:[%s1 + $0x40] sm:$0xff]
    %v37 = vld [vmem:[%s1 + $0x48] sm:$0xff]
    %v38 = vld [vmem:[%s1 + $0x50] sm:$0xff]
    %v39 = vld [vmem:[%s1 + $0x58] sm:$0xff]
    %v40 = vld [vmem:[%s1 + $0x60] sm:$0xff]
    %v41 = vld [vmem:[%s1 + $0x68] sm:$0xff]
    %v42 = vld [vmem:[%s1 + $0x70] sm:$0xff]
    %v43 = vld [vmem:[%s1 + $0x78] sm:$0xff]
    %44 = vmatprep.subr.mxu0 0.0
    %45 = vmatpush1.xpose.msra.mxu0 %v28
    %46 = vmatprep.subr.mxu0 0.0
    %47 = vmatpush1.xpose.msra.mxu0 %v29
    %48 = vmatprep.subr.mxu0 0.0
    %49 = vmatpush1.xpose.msra.mxu0 %v30
    %50 = vmatprep.subr.mxu0 0.0
    %51 = vmatpush1.xpose.msra.mxu0 %v31
    %52 = vmatprep.subr.mxu0 0.0
    %53 = vmatpush1.xpose.msra.mxu0 %v32
    %54 = vmatprep.subr.mxu0 0.0
    %55 = vmatpush1.xpose.msra.mxu0 %v33
    %56 = vmatprep.subr.mxu0 0.0
    %57 = vmatpush1.xpose.msra.mxu0 %v34
    %58 = vmatprep.subr.mxu0 0.0
    %59 = vmatpush1.xpose.msra.mxu0 %v35
    %60 = vmatprep.subr.mxu0 0.0
    %61 = vmatpush1.xpose.msra.mxu0 %v36
    %62 = vmatprep.subr.mxu0 0.0
    %63 = vmatpush1.xpose.msra.mxu0 %v37
    %64 = vmatprep.subr.mxu0 0.0
    %65 = vmatpush1.xpose.msra.mxu0 %v38
    %66 = vmatprep.subr.mxu0 0.0
    %67 = vmatpush1.xpose.msra.mxu0 %v39
    %68 = vmatprep.subr.mxu0 0.0
    %69 = vmatpush1.xpose.msra.mxu0 %v40
    %70 = vmatprep.subr.mxu0 0.0
    %71 = vmatpush1.xpose.msra.mxu0 %v41
    %72 = vmatprep.subr.mxu0 0.0
    %73 = vmatpush1.xpose.msra.mxu0 %v42
    %74 = vmatprep.subr.mxu0 0.0
    %75 = vmatpush1.xpose.msra.mxu0 %v43
    %76 = vmatprep.subr.mxu0 0.0
    %77 = vmatpush1.xpose.msra.mxu0 0.0
    %78 = vmatprep.subr.mxu0 0.0
    %79 = vmatpush1.xpose.msra.mxu0 0.0
    %80 = vmatprep.subr.mxu0 0.0
    %81 = vmatpush1.xpose.msra.mxu0 0.0
    %82 = vmatprep.subr.mxu0 0.0
    %83 = vmatpush1.xpose.msra.mxu0 0.0
    %84 = vmatprep.subr.mxu0 0.0
    %85 = vmatpush1.xpose.msra.mxu0 0.0
    %86 = vmatprep.subr.mxu0 0.0
    %87 = vmatpush1.xpose.msra.mxu0 0.0
    %88 = vmatprep.subr.mxu0 0.0
    %89 = vmatpush1.xpose.msra.mxu0 0.0
    %90 = vmatprep.subr.mxu0 0.0
    %91 = vmatpush1.xpose.msra.mxu0 0.0
    %92 = vmatprep.subr.mxu0 0.0
    %93 = vmatpush1.xpose.msra.mxu0 0.0
    %94 = vmatprep.subr.mxu0 0.0
    %95 = vmatpush1.xpose.msra.mxu0 0.0
    %96 = vmatprep.subr.mxu0 0.0
    %97 = vmatpush1.xpose.msra.mxu0 0.0
    %98 = vmatprep.subr.mxu0 0.0
    %99 = vmatpush1.xpose.msra.mxu0 0.0
    %100 = vmatprep.subr.mxu0 0.0
    %101 = vmatpush1.xpose.msra.mxu0 0.0
    %102 = vmatprep.subr.mxu0 0.0
    %103 = vmatpush1.xpose.msra.mxu0 0.0
    %104 = vmatprep.subr.mxu0 0.0
    %105 = vmatpush1.xpose.msra.mxu0 0.0
    %106 = vmatprep.subr.mxu0 0.0
    %107 = vmatpush1.xpose.msra.mxu0 0.0
    %108 = vmatprep.mubr.f32.mxu0 0.0
    %109 = vmatmul.mubr.f32.gmra.mrb[0].mxu0 %v27
    %v110 = vpop.f32.mrb[0].mxu0
    %v111 = vadd.f32 0.0, %v110
    %v112 = vpop.f32.mrb[0].mxu0
    %113 = vdwg.mxu0
    %v114 = vadd.f32 %v26, %v111
    %115 = vst [vmem:[#allocation2] sm:$0xff] %v114
    // Predicated region
    $region26: #{feedforward_relu_block.1} parent=1 // pred_check
      %p116 = pneg %p21
    $region27: #{feedforward_relu_block.1} parent=1 // pred_check_branch
      %118 = sbr.rel (%p116) target = $region29
    $region28: #{feedforward_relu_block.1} parent=1 // pred_region
      %v119 = vld [vmem:[#allocation2] sm:$0xff]
      %v120 = vld [vmem:[%s2] sm:$0x1]
      %v122 = vlaneseq
      %v123 = vshrl.u32 %v122, 7
      %v124 = vsub.s32 0, %v123
      %v125 = vrot.slane %v120, %v124
      %v127 = vadd.f32 %v119, %v125
      %v128 = vmax.f32 %v127, 0.0
      %v129 = vld [vmem:[%s3] sm:$0x1]
      %v131 = vlaneseq
      %v132 = vshrl.u32 %v131, 7
      %v133 = vsub.s32 0, %v132
      %v134 = vrot.slane %v129, %v133
      %v136 = vmul.f32 %v128, %v134
      %v137 = vld [vmem:[%s4] sm:$0x1]
      %v139 = vlaneseq
      %v140 = vshrl.u32 %v139, 7
      %v141 = vsub.s32 0, %v140
      %v142 = vrot.slane %v137, %v141
      %v144 = vadd.f32 %v136, %v142
      %145 = vst [vmem:[#allocation3] sm:$0xff] %v144
    $region29: #{feedforward_relu_block.1} parent=1 // pred_fallthru
      _
    // Predicated region
    $region30: #{feedforward_relu_block.1} parent=1 // pred_check
      _
    $region31: #{feedforward_relu_block.1} parent=1 // pred_check_branch
      %147 = sbr.rel (0) target = $region33
    $region32: #{feedforward_relu_block.1} parent=1 // pred_region
      %s149 = ssub.s32 128, 128
      %150 = vsyncadd [#allocation4], %s149
      %s152 = sshll.u32 [#allocation3], 4
      %s153 = int_to_ptr.vmem [resolvable:$true] %s152
      %155 = dma.vmem_to_hbm [thread:$0]  %s153, 128, %s5, [#allocation4]
    $region33: #{feedforward_relu_block.1} parent=1 // pred_fallthru
      _
    // Predicated region
    $region34: #{feedforward_relu_block.1} parent=1 // pred_check
      _
    $region35: #{feedforward_relu_block.1} parent=1 // pred_check_branch
      %157 = sbr.rel (0) target = $region37
    $region36: #{feedforward_relu_block.1} parent=1 // pred_region
      %158 = dma.done [#allocation4], 128
    $region37: #{feedforward_relu_block.1} parent=1 // pred_fallthru
      _
    %159 = vsyncpa [#allocation4], 1

</llo_original>
